<compile_context>
chip_gen: v7x
topology: tpu7x:2x2x1
jax: 0.10.0
libtpu: 0.0.40
codegen_flags: <defaults>
</compile_context>

<pallas_src>
import jax
import jax.numpy as jnp
from jax.experimental import pallas as pl
from jax.experimental.pallas import tpu as pltpu


def _round_up(n, m):
    return ((n + m - 1) // m) * m


def _pitch_mlp_kernel(s_ref, w1_ref, w2_ref, w3_ref, o_ref):
    """Column-major fused MLP: all activations are (features, batch_tile)."""
    num_types = w1_ref.shape[1] - 3           # T  (W1a is (H+1, T+3))
    tb = s_ref.shape[1]

    s = s_ref[...]                            # (4, TB) f32
    pt = s[0:1, :].astype(jnp.int32)          # pitch ids (small ints, exact in f32)
    row_ids = jax.lax.broadcasted_iota(jnp.int32, (num_types, tb), 0)
    onehot = (row_ids == pt).astype(jnp.float32)                  # (T, TB)

    # fc1 (embedding + b1 pre-folded into w1_ref) — single MXU contraction.
    feats = jnp.concatenate([onehot, s[1:4, :]], axis=0)          # (T+3, TB)
    h = jnp.dot(w1_ref[...], feats, preferred_element_type=jnp.float32)
    h = jnp.maximum(h, 0.0)                   # (H+1, TB); row H == 1 (bias row)

    # fc2 (+b2 via the constant-1 row; W2a passes the 1-row through) + relu.
    h = jnp.dot(w2_ref[...], h, preferred_element_type=jnp.float32)
    h = jnp.maximum(h, 0.0)                   # (H+1, TB); row H == 1

    # fc3 (+b3 via the constant-1 row) — lane-dense (5, TB) store.
    o_ref[...] = jnp.dot(w3_ref[...], h, preferred_element_type=jnp.float32)


def _fold_params(params):
    """Fold embedding lookup + all biases into 3 augmented column-major tables."""
    f32 = jnp.float32
    emb = params["embedding"].astype(f32)                         # (T, E)
    w1, b1 = params["w1"].astype(f32), params["b1"].astype(f32)   # (H, E+3), (H,)
    w2, b2 = params["w2"].astype(f32), params["b2"].astype(f32)   # (H, H),   (H,)
    w3, b3 = params["w3"].astype(f32), params["b3"].astype(f32)   # (O, H),   (O,)

    T, E = emb.shape
    H = w1.shape[0]
    O = w3.shape[0]

    # fc1: embedding columns folded against emb.T; b1 folded into the one-hot
    # columns (each one-hot column sums to exactly 1).
    w1e = w1[:, :E] @ emb.T + b1[:, None]                         # (H, T)
    w1s = w1[:, E:]                                               # (H, 3)
    ones_row = jnp.concatenate([jnp.ones((1, T), f32),
                                jnp.zeros((1, 3), f32)], axis=1)  # constant-1 output row
    w1a = jnp.concatenate(
        [jnp.concatenate([w1e, w1s], axis=1), ones_row], axis=0)  # (H+1, T+3)

    # fc2: bias as an extra input column; pass the constant-1 row through.
    passthru = jnp.zeros((1, H + 1), f32).at[0, H].set(1.0)
    w2a = jnp.concatenate(
        [jnp.concatenate([w2, b2[:, None]], axis=1), passthru], axis=0)   # (H+1, H+1)

    # fc3: bias as an extra input column.
    w3a = jnp.concatenate([w3, b3[:, None]], axis=1)              # (O, H+1)
    return w1a, w2a, w3a, T, H, O


def _pick_tile(batch, batch_tile):
    """Lane tile: multiple of 128, large enough to amortize ~0.35us/step fixed
    overhead, but capped at ceil(B/2) so the grid keeps >=2 parallel steps for
    v7x's two TensorCores whenever the batch allows it."""
    half = _round_up(max((batch + 1) // 2, 1), 128)
    return max(128, min(_round_up(batch_tile, 128), half))


def pitch_outcome_forward_slab(feats4, params, *, batch_tile=4096):
    """Core entry point: feats4 is a column-major (4, B) f32 slab
    (row 0 = pitch id as float, rows 1-3 = velocity / x / y).
    Returns the column-major (5, B) output slab (no transpose pass)."""
    feats4 = feats4.astype(jnp.float32)
    w1a, w2a, w3a, T, H, O = _fold_params(params)

    B = feats4.shape[1]
    TB = _pick_tile(B, batch_tile)
    Bp = _round_up(B, TB)
    if Bp != B:
        # Pad columns carry pitch id 0 (valid) + zero scalars; sliced off below.
        feats4 = jnp.pad(feats4, ((0, 0), (0, Bp - B)))

    grid = (Bp // TB,)
    tile = lambda i: (0, i)      # batch-tiled streams
    const = lambda i: (0, 0)     # resident weights (fetched once, reused)

    flops = 2 * Bp * ((H + 1) * (T + 3) + (H + 1) * (H + 1) + O * (H + 1))
    bytes_accessed = 4 * (feats4.size + O * Bp + w1a.size + w2a.size + w3a.size)

    # Double-buffered streams + f32 intermediates per tile; only raise the
    # scoped-VMEM limit if a very large batch_tile pushes past v5e's 16 MiB.
    est_vmem = 4 * TB * (2 * (4 + O) + 4 * (H + 1)) + 8 * (w1a.size + w2a.size + w3a.size)
    vmem_limit = None
    if est_vmem > 12 * 1024 * 1024:
        vmem_limit = min(2 * est_vmem, 64 * 1024 * 1024)

    out_col = pl.pallas_call(
        _pitch_mlp_kernel,
        out_shape=jax.ShapeDtypeStruct((O, Bp), jnp.float32),
        grid=grid,
        in_specs=[
            pl.BlockSpec((4, TB), tile),           # pitch-id + vel/x/y slab
            pl.BlockSpec((H + 1, T + 3), const),   # fused emb+fc1 (+b1, +1-row)
            pl.BlockSpec((H + 1, H + 1), const),   # fc2 (+b2, pass-through row)
            pl.BlockSpec((O, H + 1), const),       # fc3 (+b3)
        ],
        out_specs=pl.BlockSpec((O, TB), tile),
        compiler_params=pltpu.CompilerParams(
            dimension_semantics=("parallel",),
            vmem_limit_bytes=vmem_limit),
        cost_estimate=pl.CostEstimate(
            flops=flops, transcendentals=0, bytes_accessed=bytes_accessed),
    )(feats4, w1a, w2a, w3a)

    return out_col[:, :B] if Bp != B else out_col


def pitch_outcome_forward(pitch_type, velocity, x, y, params, *, batch_tile=4096):
    """Row-major convenience wrapper matching the PyTorch interface:
    (B,) inputs -> (B, 5).  For peak throughput call
    pitch_outcome_forward_slab directly with a pre-laid-out (4, B) slab and
    consume the (5, B) result (skips the stack/transpose HBM passes)."""
    feats4 = jnp.stack([pitch_type.astype(jnp.float32),
                        velocity.astype(jnp.float32),
                        x.astype(jnp.float32),
                        y.astype(jnp.float32)], axis=0)           # (4, B)
    return pitch_outcome_forward_slab(feats4, params, batch_tile=batch_tile).T


def init_params(key, num_pitch_types, embedding_dim=4, hidden_dim=32, out_dim=5):
    """Deterministic synthetic params with PyTorch-style (out, in) weight layout."""
    k_emb, k_w1, k_b1, k_w2, k_b2, k_w3, k_b3 = jax.random.split(key, 7)
    in_dim = embedding_dim + 3
    return {
        "embedding": jax.random.normal(k_emb, (num_pitch_types, embedding_dim), jnp.float32),
        "w1": jax.random.normal(k_w1, (hidden_dim, in_dim), jnp.float32) * 0.3,
        "b1": jax.random.normal(k_b1, (hidden_dim,), jnp.float32) * 0.1,
        "w2": jax.random.normal(k_w2, (hidden_dim, hidden_dim), jnp.float32) * 0.3,
        "b2": jax.random.normal(k_b2, (hidden_dim,), jnp.float32) * 0.1,
        "w3": jax.random.normal(k_w3, (out_dim, hidden_dim), jnp.float32) * 0.3,
        "b3": jax.random.normal(k_b3, (out_dim,), jnp.float32) * 0.1,
    }


def _reference(pitch_type, velocity, x, y, params):
    """Pure-JAX row-major reference matching the PyTorch module."""
    pe = jnp.take(params["embedding"], pitch_type, axis=0)
    feats = jnp.concatenate([pe, velocity[:, None], x[:, None], y[:, None]], axis=1)
    h1 = jnp.maximum(feats @ params["w1"].T + params["b1"], 0.0)
    h2 = jnp.maximum(h1 @ params["w2"].T + params["b2"], 0.0)
    return h2 @ params["w3"].T + params["b3"]


if __name__ == "__main__":
    B = 8
    NUM_PITCH_TYPES = 6
    EMBED_DIM = 4
    HIDDEN_DIM = 32
    OUT_DIM = 5

    key = jax.random.PRNGKey(0)
    k_params, k_pt, k_vel, k_x, k_y = jax.random.split(key, 5)

    params = init_params(k_params, NUM_PITCH_TYPES, EMBED_DIM, HIDDEN_DIM, OUT_DIM)

    pitch_type = jax.random.randint(k_pt, (B,), 0, NUM_PITCH_TYPES, dtype=jnp.int32)
    velocity = jax.random.uniform(k_vel, (B,), jnp.float32, 70.0, 100.0)
    x_loc = jax.random.uniform(k_x, (B,), jnp.float32, -1.0, 1.0)
    y_loc = jax.random.uniform(k_y, (B,), jnp.float32, 1.0, 4.0)

    out = pitch_outcome_forward(pitch_type, velocity, x_loc, y_loc, params)
    out = jax.block_until_ready(out)

    ref = _reference(pitch_type, velocity, x_loc, y_loc, params)
    assert out.shape == (B, OUT_DIM)
    assert jnp.allclose(out, ref, atol=1e-3, rtol=1e-3), "mismatch vs reference"

    print("KERNEL_OK")
</pallas_src>

<mosaic_0001>
module attributes {stable_mosaic.version = 11 : i64} {
  func.func @_pitch_mlp_kernel(%arg0: i32, %arg1: memref<4x128xf32, #tpu.memory_space<vmem>>, %arg2: memref<33x9xf32, #tpu.memory_space<vmem>>, %arg3: memref<33x33xf32, #tpu.memory_space<vmem>>, %arg4: memref<5x33xf32, #tpu.memory_space<vmem>>, %arg5: memref<5x128xf32, #tpu.memory_space<vmem>>) attributes {dimension_semantics = [#tpu.dimension_semantics<parallel>], iteration_bounds = array<i64: 1>, scalar_prefetch = 0 : i64, scratch_operands = 0 : i64, tpu.core_type = #tpu.core_type<tc>, window_params = [{transform_indices = @transform_0, window_bounds = array<i64: 4, 128>}, {pipeline_mode = #tpu.pipeline_mode<synchronous>, transform_indices = @transform_1, window_bounds = array<i64: 33, 9>}, {pipeline_mode = #tpu.pipeline_mode<synchronous>, transform_indices = @transform_2, window_bounds = array<i64: 33, 33>}, {pipeline_mode = #tpu.pipeline_mode<synchronous>, transform_indices = @transform_3, window_bounds = array<i64: 5, 33>}, {transform_indices = @transform_4, window_bounds = array<i64: 5, 128>}]} {
    %c0 = arith.constant 0 : index
    %c0_0 = arith.constant 0 : index
    %0 = vector.load %arg1[%c0, %c0_0] : memref<4x128xf32, #tpu.memory_space<vmem>>, vector<4x128xf32>
    %1 = vector.extract_strided_slice %0 {offsets = [0, 0], sizes = [1, 128], strides = [1, 1]} : vector<4x128xf32> to vector<1x128xf32>
    %2 = arith.fptosi %1 : vector<1x128xf32> to vector<1x128xi32>
    %3 = tpu.iota {dimensions = array<i32: 0>} : vector<6x128xi32>
    %4 = vector.broadcast %2 : vector<1x128xi32> to vector<6x128xi32>
    %5 = arith.cmpi eq, %3, %4 : vector<6x128xi32>
    %6 = arith.extui %5 : vector<6x128xi1> to vector<6x128xi32>
    %7 = arith.sitofp %6 : vector<6x128xi32> to vector<6x128xf32>
    %8 = vector.extract_strided_slice %0 {offsets = [1, 0], sizes = [3, 128], strides = [1, 1]} : vector<4x128xf32> to vector<3x128xf32>
    %9 = tpu.concatenate %7, %8 in 0 : vector<6x128xf32>, vector<3x128xf32> -> vector<9x128xf32>
    %c0_1 = arith.constant 0 : index
    %c0_2 = arith.constant 0 : index
    %10 = vector.load %arg2[%c0_1, %c0_2] : memref<33x9xf32, #tpu.memory_space<vmem>>, vector<33x9xf32>
    %cst = arith.constant dense<0.000000e+00> : vector<33x128xf32>
    %11 = tpu.matmul %10, %9, %cst {dimension_numbers = #tpu.dot_dimension_numbers<[1], [0], [0], [1], [0, 0, 1, 1], [], []>} : vector<33x9xf32>, vector<9x128xf32>, vector<33x128xf32> -> vector<33x128xf32>
    %cst_3 = arith.constant 0.000000e+00 : f32
    %12 = vector.broadcast %cst_3 : f32 to vector<33x128xf32>
    %13 = arith.maximumf %11, %12 : vector<33x128xf32>
    %c0_4 = arith.constant 0 : index
    %c0_5 = arith.constant 0 : index
    %14 = vector.load %arg3[%c0_4, %c0_5] : memref<33x33xf32, #tpu.memory_space<vmem>>, vector<33x33xf32>
    %cst_6 = arith.constant dense<0.000000e+00> : vector<33x128xf32>
    %15 = tpu.matmul %14, %13, %cst_6 {dimension_numbers = #tpu.dot_dimension_numbers<[1], [0], [0], [1], [0, 0, 1, 1], [], []>} : vector<33x33xf32>, vector<33x128xf32>, vector<33x128xf32> -> vector<33x128xf32>
    %cst_7 = arith.constant 0.000000e+00 : f32
    %16 = vector.broadcast %cst_7 : f32 to vector<33x128xf32>
    %17 = arith.maximumf %15, %16 : vector<33x128xf32>
    %c0_8 = arith.constant 0 : index
    %c0_9 = arith.constant 0 : index
    %18 = vector.load %arg4[%c0_8, %c0_9] : memref<5x33xf32, #tpu.memory_space<vmem>>, vector<5x33xf32>
    %cst_10 = arith.constant dense<0.000000e+00> : vector<5x128xf32>
    %19 = tpu.matmul %18, %17, %cst_10 {dimension_numbers = #tpu.dot_dimension_numbers<[1], [0], [0], [1], [0, 0, 1, 1], [], []>} : vector<5x33xf32>, vector<33x128xf32>, vector<5x128xf32> -> vector<5x128xf32>
    %c0_11 = arith.constant 0 : index
    %c0_12 = arith.constant 0 : index
    %20 = vector.load %arg5[%c0_11, %c0_12] : memref<5x128xf32, #tpu.memory_space<vmem>>, vector<5x128xf32>
    tpu.vector_store %arg5[%c0_11, %c0_12], %19 {strides = array<i32>} : memref<5x128xf32, #tpu.memory_space<vmem>>, vector<5x128xf32>,
    return
  }
  func.func @transform_0(%arg0: i32) -> (i32, i32) {
    %c0_i32 = arith.constant 0 : i32
    %c0_i32_0 = arith.constant 0 : i32
    return %c0_i32, %arg0 : i32, i32
  }
  func.func @transform_1(%arg0: i32) -> (i32, i32) {
    %c0_i32 = arith.constant 0 : i32
    %c0_i32_0 = arith.constant 0 : i32
    %c0_i32_1 = arith.constant 0 : i32
    return %c0_i32, %c0_i32_0 : i32, i32
  }
  func.func @transform_2(%arg0: i32) -> (i32, i32) {
    %c0_i32 = arith.constant 0 : i32
    %c0_i32_0 = arith.constant 0 : i32
    %c0_i32_1 = arith.constant 0 : i32
    return %c0_i32, %c0_i32_0 : i32, i32
  }
  func.func @transform_3(%arg0: i32) -> (i32, i32) {
    %c0_i32 = arith.constant 0 : i32
    %c0_i32_0 = arith.constant 0 : i32
    %c0_i32_1 = arith.constant 0 : i32
    return %c0_i32, %c0_i32_0 : i32, i32
  }
  func.func @transform_4(%arg0: i32) -> (i32, i32) {
    %c0_i32 = arith.constant 0 : i32
    %c0_i32_0 = arith.constant 0 : i32
    return %c0_i32, %arg0 : i32, i32
  }
}

</mosaic_0001>

<llo_original>
// kernel: tpu_custom_call.1
$region0: #{tpu_custom_call.1}
  #allocation0 [shape = 'u32[]', space=smem, size = 0x4, offset = 0x4, fixed_abs, tag = 'smem constant byte address 0x4 - core index']
  #allocation1 [shape = 'u32[144,128]{1,0:T(1,128)}', space=vmem, size = 0x12000, scoped, tag = 'internal scratch']
  %s0 = inlined_call_operand.vmem [shape: f32[4,128], index: 0, kind: input, shape index: {}]
  %s1 = inlined_call_operand.vmem [shape: f32[33,9], index: 1, kind: input, shape index: {}]
  %s2 = inlined_call_operand.vmem [shape: f32[33,33], index: 2, kind: input, shape index: {}]
  %s3 = inlined_call_operand.vmem [shape: f32[5,33], index: 3, kind: input, shape index: {}]
  %s4 = inlined_call_operand.hbm [shape: f32[5,128], index: 4, kind: output, shape index: {}]
  %s5 = sld [smem:[#allocation0]]
  $region26: #{tpu_custom_call.1} parent=0
    _
  %s7 = ssub.s32 1, %s5
  %s8 = scalar_select 0, %s7, %s5
  $region1: #{tpu_custom_call.1} parent=0
    #allocation2 [shape = 'u8[4096]{0}', space=vmem, size = 0x1000, scoped, tag = 'output window, operand 0, single buffered']
    #allocation3 [shape = 's32[1]{0}', space=sflag, size = 0x4, scoped, tag = 'scoped memory for tpu_custom_call.1']
    %9 = vsyncpa [#allocation3], 0
    // Predicated region
    $region2: #{tpu_custom_call.1} parent=1 // pred_check
      _
    $region3: #{tpu_custom_call.1} parent=1 // pred_check_branch
      %11 = sbr.rel (0) target = $region5
    $region4: #{tpu_custom_call.1} parent=1 // pred_region
      _
    $region5: #{tpu_custom_call.1} parent=1 // pred_fallthru
      _
    // Predicated region
    $region6: #{tpu_custom_call.1} parent=1 // pred_check
      _
    $region7: #{tpu_custom_call.1} parent=1 // pred_check_branch
      %13 = sbr.rel (0) target = $region9
    $region8: #{tpu_custom_call.1} parent=1 // pred_region
      _
    $region9: #{tpu_custom_call.1} parent=1 // pred_fallthru
      _
    // Predicated region
    $region10: #{tpu_custom_call.1} parent=1 // pred_check
      _
    $region11: #{tpu_custom_call.1} parent=1 // pred_check_branch
      %15 = sbr.rel (0) target = $region13
    $region12: #{tpu_custom_call.1} parent=1 // pred_region
      _
    $region13: #{tpu_custom_call.1} parent=1 // pred_fallthru
      _
    // Predicated region
    $region14: #{tpu_custom_call.1} parent=1 // pred_check
      _
    $region15: #{tpu_custom_call.1} parent=1 // pred_check_branch
      %17 = sbr.rel (0) target = $region17
    $region16: #{tpu_custom_call.1} parent=1 // pred_region
      _
    $region17: #{tpu_custom_call.1} parent=1 // pred_fallthru
      _
    %v18 = vld [vmem:[%s0] sm:$0xf]
    %v19 = vcvt.f32.s32.to.zero.pseudo %v18
    %v20 = vlaneseq
    %v21 = vshrl.u32 %v20, 7
    %v22 = vlaneseq
    %v23 = vshrl.u32 %v22, 7
    %v24 = vsub.s32 0, %v23
    %v25 = vrot.slane %v19, %v24
    %vm26 = vcmp.eq.s32.totalorder %v21, %v25
    %v27 = vsel %vm26, 1, 0
    %v28 = vcvt.s32.f32 %v27
    %v30 = vrot.slane %v18, 3
    %vm32 = vcmask 1045504
    %v33 = vsel %vm32, %v28, %v30
    %v34 = vld [vmem:[%s1] sm:$0xff]
    %v35 = vld [vmem:[%s1 + $0x8] sm:$0xff]
    %v36 = vld [vmem:[%s1 + $0x10] sm:$0xff]
    %v37 = vld [vmem:[%s1 + $0x18] sm:$0xff]
    %v38 = vld [vmem:[%s1 + $0x20] sm:$0x1]
    %vm39 = vcmask 72704
    %v41 = vsel %vm39, %v34, 0
    %v44 = vsel %vm39, %v35, 0
    %v47 = vsel %vm39, %v36, 0
    %v50 = vsel %vm39, %v37, 0
    %v53 = vsel %vm39, %v38, 0
    %vm55 = vcmask 1040384
    %v56 = vsel %vm55, %v30, 0
    %58 = vmatprep.subr.mxu0 0.0
    %59 = vmatpush1.msra.mxu0 %v33
    %60 = vmatprep.subr.mxu0 0.0
    %61 = vmatpush1.msra.mxu0 %v56
    %62 = vmatprep.subr.mxu0 0.0
    %63 = vmatpush1.msra.mxu0 0.0
    %64 = vmatprep.subr.mxu0 0.0
    %65 = vmatpush1.msra.mxu0 0.0
    %66 = vmatprep.subr.mxu0 0.0
    %67 = vmatpush1.msra.mxu0 0.0
    %68 = vmatprep.subr.mxu0 0.0
    %69 = vmatpush1.msra.mxu0 0.0
    %70 = vmatprep.subr.mxu0 0.0
    %71 = vmatpush1.msra.mxu0 0.0
    %72 = vmatprep.subr.mxu0 0.0
    %73 = vmatpush1.msra.mxu0 0.0
    %74 = vmatprep.subr.mxu0 0.0
    %75 = vmatpush1.msra.mxu0 0.0
    %76 = vmatprep.subr.mxu0 0.0
    %77 = vmatpush1.msra.mxu0 0.0
    %78 = vmatprep.subr.mxu0 0.0
    %79 = vmatpush1.msra.mxu0 0.0
    %80 = vmatprep.subr.mxu0 0.0
    %81 = vmatpush1.msra.mxu0 0.0
    %82 = vmatprep.subr.mxu0 0.0
    %83 = vmatpush1.msra.mxu0 0.0
    %84 = vmatprep.subr.mxu0 0.0
    %85 = vmatpush1.msra.mxu0 0.0
    %86 = vmatprep.subr.mxu0 0.0
    %87 = vmatpush1.msra.mxu0 0.0
    %88 = vmatprep.subr.mxu0 0.0
    %89 = vmatpush1.msra.mxu0 0.0
    %90 = vmatprep.subr.mxu0 0.0
    %91 = vmatpush1.msra.mxu0 0.0
    %92 = vmatprep.subr.mxu0 0.0
    %93 = vmatpush1.msra.mxu0 0.0
    %94 = vmatprep.subr.mxu0 0.0
    %95 = vmatpush1.msra.mxu0 0.0
    %96 = vmatprep.subr.mxu0 0.0
    %97 = vmatpush1.msra.mxu0 0.0
    %98 = vmatprep.subr.mxu0 0.0
    %99 = vmatpush1.msra.mxu0 0.0
    %100 = vmatprep.subr.mxu0 0.0
    %101 = vmatpush1.msra.mxu0 0.0
    %102 = vmatprep.subr.mxu0 0.0
    %103 = vmatpush1.msra.mxu0 0.0
    %104 = vmatprep.subr.mxu0 0.0
    %105 = vmatpush1.msra.mxu0 0.0
    %106 = vmatprep.subr.mxu0 0.0
    %107 = vmatpush1.msra.mxu0 0.0
    %108 = vmatprep.subr.mxu0 0.0
    %109 = vmatpush1.msra.mxu0 0.0
    %110 = vmatprep.subr.mxu0 0.0
    %111 = vmatpush1.msra.mxu0 0.0
    %112 = vmatprep.subr.mxu0 0.0
    %113 = vmatpush1.msra.mxu0 0.0
    %114 = vmatprep.subr.mxu0 0.0
    %115 = vmatpush1.msra.mxu0 0.0
    %116 = vmatprep.subr.mxu0 0.0
    %117 = vmatpush1.msra.mxu0 0.0
    %118 = vmatprep.subr.mxu0 0.0
    %119 = vmatpush1.msra.mxu0 0.0
    %120 = vmatprep.subr.mxu0 0.0
    %121 = vmatpush1.msra.mxu0 0.0
    %122 = vmatprep.mubr.f32.mxu0 0.0
    %123 = vmatmul.mubr.f32.gmra.mrb[0].mxu0 %v41
    %v124 = vpop.f32.mrb[0].mxu0
    %v125 = vadd.f32 0.0, %v124
    %v126 = vpop.f32.mrb[0].mxu0
    %127 = vmatprep.mubr.f32.mxu0 0.0
    %128 = vmatmul.mubr.f32.gmra.mrb[0].mxu0 %v44
    %v129 = vpop.f32.mrb[0].mxu0
    %v130 = vadd.f32 0.0, %v129
    %v131 = vpop.f32.mrb[0].mxu0
    %132 = vmatprep.mubr.f32.mxu0 0.0
    %133 = vmatmul.mubr.f32.gmra.mrb[0].mxu0 %v47
    %v134 = vpop.f32.mrb[0].mxu0
    %v135 = vadd.f32 0.0, %v134
    %v136 = vpop.f32.mrb[0].mxu0
    %137 = vmatprep.mubr.f32.mxu0 0.0
    %138 = vmatmul.mubr.f32.gmra.mrb[0].mxu0 %v50
    %v139 = vpop.f32.mrb[0].mxu0
    %v140 = vadd.f32 0.0, %v139
    %v141 = vpop.f32.mrb[0].mxu0
    %142 = vmatprep.mubr.f32.mxu0 0.0
    %143 = vmatmul.mubr.f32.gmra.mrb[0].mxu0 %v53
    %v144 = vpop.f32.mrb[0].mxu0
    %v145 = vadd.f32 0.0, %v144
    %v146 = vpop.f32.mrb[0].mxu0
    %147 = vdwg.mxu0
    %v148 = vmax.f32 %v125, 0.0
    %v149 = vmax.f32 %v130, 0.0
    %v150 = vmax.f32 %v135, 0.0
    %v151 = vmax.f32 %v140, 0.0
    %v152 = vmax.f32 %v145, 0.0
    %v153 = vld [vmem:[%s2] sm:$0xff]
    %v154 = vld [vmem:[%s2 + $0x8] sm:$0xff]
    %v155 = vld [vmem:[%s2 + $0x10] sm:$0xff]
    %v156 = vld [vmem:[%s2 + $0x18] sm:$0xff]
    %v157 = vld [vmem:[%s2 + $0x20] sm:$0x1]
    %vm158 = vcmask 269312
    %v160 = vsel %vm158, %v153, 0
    %v163 = vsel %vm158, %v154, 0
    %v166 = vsel %vm158, %v155, 0
    %v169 = vsel %vm158, %v156, 0
    %v172 = vsel %vm158, %v157, 0
    %v175 = vsel %vm55, %v152, 0
    %177 = vmatprep.subr.mxu0 0.0
    %178 = vmatpush1.msra.mxu0 %v148
    %179 = vmatprep.subr.mxu0 0.0
    %180 = vmatpush1.msra.mxu0 %v149
    %181 = vmatprep.subr.mxu0 0.0
    %182 = vmatpush1.msra.mxu0 %v150
    %183 = vmatprep.subr.mxu0 0.0
    %184 = vmatpush1.msra.mxu0 %v151
    %185 = vmatprep.subr.mxu0 0.0
    %186 = vmatpush1.msra.mxu0 %v175
    %187 = vmatprep.subr.mxu0 0.0
    %188 = vmatpush1.msra.mxu0 0.0
    %189 = vmatprep.subr.mxu0 0.0
    %190 = vmatpush1.msra.mxu0 0.0
    %191 = vmatprep.subr.mxu0 0.0
    %192 = vmatpush1.msra.mxu0 0.0
    %193 = vmatprep.subr.mxu0 0.0
    %194 = vmatpush1.msra.mxu0 0.0
    %195 = vmatprep.subr.mxu0 0.0
    %196 = vmatpush1.msra.mxu0 0.0
    %197 = vmatprep.subr.mxu0 0.0
    %198 = vmatpush1.msra.mxu0 0.0
    %199 = vmatprep.subr.mxu0 0.0
    %200 = vmatpush1.msra.mxu0 0.0
    %201 = vmatprep.subr.mxu0 0.0
    %202 = vmatpush1.msra.mxu0 0.0
    %203 = vmatprep.subr.mxu0 0.0
    %204 = vmatpush1.msra.mxu0 0.0
    %205 = vmatprep.subr.mxu0 0.0
    %206 = vmatpush1.msra.mxu0 0.0
    %207 = vmatprep.subr.mxu0 0.0
    %208 = vmatpush1.msra.mxu0 0.0
    %209 = vmatprep.subr.mxu0 0.0
    %210 = vmatpush1.msra.mxu0 0.0
    %211 = vmatprep.subr.mxu0 0.0
    %212 = vmatpush1.msra.mxu0 0.0
    %213 = vmatprep.subr.mxu0 0.0
    %214 = vmatpush1.msra.mxu0 0.0
    %215 = vmatprep.subr.mxu0 0.0
    %216 = vmatpush1.msra.mxu0 0.0
    %217 = vmatprep.subr.mxu0 0.0
    %218 = vmatpush1.msra.mxu0 0.0
    %219 = vmatprep.subr.mxu0 0.0
    %220 = vmatpush1.msra.mxu0 0.0
    %221 = vmatprep.subr.mxu0 0.0
    %222 = vmatpush1.msra.mxu0 0.0
    %223 = vmatprep.subr.mxu0 0.0
    %224 = vmatpush1.msra.mxu0 0.0
    %225 = vmatprep.subr.mxu0 0.0
    %226 = vmatpush1.msra.mxu0 0.0
    %227 = vmatprep.subr.mxu0 0.0
    %228 = vmatpush1.msra.mxu0 0.0
    %229 = vmatprep.subr.mxu0 0.0
    %230 = vmatpush1.msra.mxu0 0.0
    %231 = vmatprep.subr.mxu0 0.0
    %232 = vmatpush1.msra.mxu0 0.0
    %233 = vmatprep.subr.mxu0 0.0
    %234 = vmatpush1.msra.mxu0 0.0
    %235 = vmatprep.subr.mxu0 0.0
    %236 = vmatpush1.msra.mxu0 0.0
    %237 = vmatprep.subr.mxu0 0.0
    %238 = vmatpush1.msra.mxu0 0.0
    %239 = vmatprep.subr.mxu0 0.0
    %240 = vmatpush1.msra.mxu0 0.0
    %241 = vmatprep.mubr.f32.mxu0 0.0
    %242 = vmatmul.mubr.f32.gmra.mrb[0].mxu0 %v160
    %v243 = vpop.f32.mrb[0].mxu0
    %v244 = vadd.f32 0.0, %v243
    %v245 = vpop.f32.mrb[0].mxu0
    %246 = vmatprep.mubr.f32.mxu0 0.0
    %247 = vmatmul.mubr.f32.gmra.mrb[0].mxu0 %v163
    %v248 = vpop.f32.mrb[0].mxu0
    %v249 = vadd.f32 0.0, %v248
    %v250 = vpop.f32.mrb[0].mxu0
    %251 = vmatprep.mubr.f32.mxu0 0.0
    %252 = vmatmul.mubr.f32.gmra.mrb[0].mxu0 %v166
    %v253 = vpop.f32.mrb[0].mxu0
    %v254 = vadd.f32 0.0, %v253
    %v255 = vpop.f32.mrb[0].mxu0
    %256 = vmatprep.mubr.f32.mxu0 0.0
    %257 = vmatmul.mubr.f32.gmra.mrb[0].mxu0 %v169
    %v258 = vpop.f32.mrb[0].mxu0
    %v259 = vadd.f32 0.0, %v258
    %v260 = vpop.f32.mrb[0].mxu0
    %261 = vmatprep.mubr.f32.mxu0 0.0
    %262 = vmatmul.mubr.f32.gmra.mrb[0].mxu0 %v172
    %v263 = vpop.f32.mrb[0].mxu0
    %v264 = vadd.f32 0.0, %v263
    %v265 = vpop.f32.mrb[0].mxu0
    %266 = vdwg.mxu0
    %v267 = vmax.f32 %v244, 0.0
    %v268 = vmax.f32 %v249, 0.0
    %v269 = vmax.f32 %v254, 0.0
    %v270 = vmax.f32 %v259, 0.0
    %v271 = vmax.f32 %v264, 0.0
    %v272 = vld [vmem:[%s3] sm:$0x1f]
    %v274 = vsel %vm158, %v272, 0
    %v277 = vsel %vm55, %v271, 0
    %279 = vmatprep.subr.mxu0 0.0
    %280 = vmatpush1.msra.mxu0 %v267
    %281 = vmatprep.subr.mxu0 0.0
    %282 = vmatpush1.msra.mxu0 %v268
    %283 = vmatprep.subr.mxu0 0.0
    %284 = vmatpush1.msra.mxu0 %v269
    %285 = vmatprep.subr.mxu0 0.0
    %286 = vmatpush1.msra.mxu0 %v270
    %287 = vmatprep.subr.mxu0 0.0
    %288 = vmatpush1.msra.mxu0 %v277
    %289 = vmatprep.subr.mxu0 0.0
    %290 = vmatpush1.msra.mxu0 0.0
    %291 = vmatprep.subr.mxu0 0.0
    %292 = vmatpush1.msra.mxu0 0.0
    %293 = vmatprep.subr.mxu0 0.0
    %294 = vmatpush1.msra.mxu0 0.0
    %295 = vmatprep.subr.mxu0 0.0
    %296 = vmatpush1.msra.mxu0 0.0
    %297 = vmatprep.subr.mxu0 0.0
    %298 = vmatpush1.msra.mxu0 0.0
    %299 = vmatprep.subr.mxu0 0.0
    %300 = vmatpush1.msra.mxu0 0.0
    %301 = vmatprep.subr.mxu0 0.0
    %302 = vmatpush1.msra.mxu0 0.0
    %303 = vmatprep.subr.mxu0 0.0
    %304 = vmatpush1.msra.mxu0 0.0
    %305 = vmatprep.subr.mxu0 0.0
    %306 = vmatpush1.msra.mxu0 0.0
    %307 = vmatprep.subr.mxu0 0.0
    %308 = vmatpush1.msra.mxu0 0.0
    %309 = vmatprep.subr.mxu0 0.0
    %310 = vmatpush1.msra.mxu0 0.0
    %311 = vmatprep.subr.mxu0 0.0
    %312 = vmatpush1.msra.mxu0 0.0
    %313 = vmatprep.subr.mxu0 0.0
    %314 = vmatpush1.msra.mxu0 0.0
    %315 = vmatprep.subr.mxu0 0.0
    %316 = vmatpush1.msra.mxu0 0.0
    %317 = vmatprep.subr.mxu0 0.0
    %318 = vmatpush1.msra.mxu0 0.0
    %319 = vmatprep.subr.mxu0 0.0
    %320 = vmatpush1.msra.mxu0 0.0
    %321 = vmatprep.subr.mxu0 0.0
    %322 = vmatpush1.msra.mxu0 0.0
    %323 = vmatprep.subr.mxu0 0.0
    %324 = vmatpush1.msra.mxu0 0.0
    %325 = vmatprep.subr.mxu0 0.0
    %326 = vmatpush1.msra.mxu0 0.0
    %327 = vmatprep.subr.mxu0 0.0
    %328 = vmatpush1.msra.mxu0 0.0
    %329 = vmatprep.subr.mxu0 0.0
    %330 = vmatpush1.msra.mxu0 0.0
    %331 = vmatprep.subr.mxu0 0.0
    %332 = vmatpush1.msra.mxu0 0.0
    %333 = vmatprep.subr.mxu0 0.0
    %334 = vmatpush1.msra.mxu0 0.0
    %335 = vmatprep.subr.mxu0 0.0
    %336 = vmatpush1.msra.mxu0 0.0
    %337 = vmatprep.subr.mxu0 0.0
    %338 = vmatpush1.msra.mxu0 0.0
    %339 = vmatprep.subr.mxu0 0.0
    %340 = vmatpush1.msra.mxu0 0.0
    %341 = vmatprep.subr.mxu0 0.0
    %342 = vmatpush1.msra.mxu0 0.0
    %343 = vmatprep.mubr.f32.mxu0 0.0
    %344 = vmatmul.mubr.f32.gmra.mrb[0].mxu0 %v274
    %v345 = vpop.f32.mrb[0].mxu0
    %v346 = vadd.f32 0.0, %v345
    %v347 = vpop.f32.mrb[0].mxu0
    %348 = vdwg.mxu0
    %349 = vst [vmem:[#allocation2] sm:$0x1f] %v346
    // Predicated region
    $region18: #{tpu_custom_call.1} parent=1 // pred_check
      _
    $region19: #{tpu_custom_call.1} parent=1 // pred_check_branch
      %351 = sbr.rel (0) target = $region21
    $region20: #{tpu_custom_call.1} parent=1 // pred_region
      %s353 = ssub.s32 128, 128
      %354 = vsyncadd [#allocation3], %s353
      %s356 = sshll.u32 [#allocation2], 4
      %s357 = int_to_ptr.vmem [resolvable:$true] %s356
      %359 = dma.vmem_to_hbm [thread:$0]  %s357, 128, %s4, [#allocation3]
    $region21: #{tpu_custom_call.1} parent=1 // pred_fallthru
      _
    // Predicated region
    $region22: #{tpu_custom_call.1} parent=1 // pred_check
      _
    $region23: #{tpu_custom_call.1} parent=1 // pred_check_branch
      %361 = sbr.rel (0) target = $region25
    $region24: #{tpu_custom_call.1} parent=1 // pred_region
      %362 = dma.done [#allocation3], 128
    $region25: #{tpu_custom_call.1} parent=1 // pred_fallthru
      _
    %363 = vsyncpa [#allocation3], 1

</llo_original>
